<compile_context>
chip_gen: v7x
topology: tpu7x:2x2x1
jax: 0.10.0
libtpu: 0.0.40
codegen_flags: <defaults>
</compile_context>

<pallas_src>
import functools
import math

import jax
import jax.numpy as jnp
from jax.experimental import pallas as pl
from jax.experimental.pallas import tpu as pltpu


def _patch_embed_kernel(x_ref, w_ref, b_ref, o_ref):
    # x_ref: (tm, K) bf16   w_ref: (K, te) bf16   b_ref: (1, te) f32   o_ref: (tm, te) f32
    acc = jnp.dot(x_ref[...], w_ref[...], preferred_element_type=jnp.float32)
    o_ref[...] = (acc + b_ref[...]).astype(o_ref.dtype)


def _round_up(x, m):
    return ((x + m - 1) // m) * m


def _pick_tiles(M, K, E):
    """Choose (tm, te) and report the double-buffered VMEM footprint."""
    # E tile: 256-wide blocks fill the v6e/v7x MXU for large embed dims;
    # otherwise a single, lane-dense full-E block.
    if E >= 512 and E % 256 == 0:
        te = 256
    else:
        te = E

    # M tile: ~512 rows reaches ~85% of the HBM roofline; keep >= 2 grid blocks
    # so both v7x TensorCores get work on small M.  16-row granularity keeps
    # bf16 sublane packing clean.
    if M >= 1024:
        tm = 512
    else:
        tm = max(16, _round_up(-(-M // 2), 16))

    # VMEM budget: double-buffered bf16 patches in + f32 out + bf16 weight + f32 bias.
    def vmem_need(tm_, te_):
        return 2 * (tm_ * K * 2 + tm_ * te_ * 4 + K * te_ * 2 + te_ * 4)

    budget = 40 << 20  # stays well inside v7x's 64 MiB VMEM
    while vmem_need(tm, te) > budget and tm > 16:
        tm = max(16, _round_up(tm // 2, 16))
    return tm, te, vmem_need(tm, te)


def prepare_proj_params(weight, bias, compute_dtype=jnp.bfloat16):
    """Hoisted out of the hot path: Conv3d weight (E, C, pd, ph, pw) -> (K, E)."""
    E = weight.shape[0]
    K = math.prod(weight.shape[1:])
    w2d = jnp.asarray(weight).reshape(E, K).T.astype(compute_dtype)   # (K, E)
    b2d = jnp.asarray(bias).reshape(1, E).astype(jnp.float32)         # (1, E)
    return w2d, b2d


def patch_embed_3d(x, w2d, b2d, *, patch_size):
    """x: (B, C, D, H, W) f32. w2d: (K, E) bf16 (pre-transposed). b2d: (1, E) f32."""
    B, C, D, H, W = x.shape
    pd, ph, pw = patch_size
    gd, gh, gw = D // pd, H // ph, W // pw
    num_patches = gd * gh * gw
    K = C * pd * ph * pw
    E = w2d.shape[1]
    M = B * num_patches

    # Patch gather + bf16 cast.  Left in JAX; allow_input_fusion lets XLA fuse this
    # chain into the pallas input DMA so x is not re-materialized in HBM.
    xp = x.reshape(B, C, gd, pd, gh, ph, gw, pw)
    xp = xp.transpose(0, 2, 4, 6, 1, 3, 5, 7)             # (B, gd, gh, gw, C, pd, ph, pw)
    patches = xp.reshape(M, K).astype(w2d.dtype)           # (M, K) bf16

    tm, te, vmem_need = _pick_tiles(M, K, E)
    grid_m = pl.cdiv(M, tm)
    grid_e = E // te
    m_pad = grid_m * tm
    if m_pad != M:                                         # padded last tile (no tm=M fallback)
        patches = jnp.pad(patches, ((0, m_pad - M), (0, 0)))

    bytes_accessed = (M * K + K * E) * 2 + (M * E + E) * 4

    out = pl.pallas_call(
        _patch_embed_kernel,
        out_shape=jax.ShapeDtypeStruct((m_pad, E), x.dtype),
        grid_spec=pltpu.PrefetchScalarGridSpec(
            num_scalar_prefetch=0,
            grid=(grid_m, grid_e),
            in_specs=[
                pl.BlockSpec((tm, K), lambda i, j: (i, 0)),
                pl.BlockSpec((K, te), lambda i, j: (0, j)),
                pl.BlockSpec((1, te), lambda i, j: (0, j)),
            ],
            out_specs=pl.BlockSpec((tm, te), lambda i, j: (i, j)),
        ),
        compiler_params=pltpu.CompilerParams(
            dimension_semantics=("parallel", "parallel"),
            vmem_limit_bytes=int(min(max(2 * vmem_need, 16 << 20), 48 << 20)),
            allow_input_fusion=[True, False, False],
        ),
        cost_estimate=pl.CostEstimate(
            flops=2 * M * K * E,
            transcendentals=0,
            bytes_accessed=bytes_accessed,
        ),
    )(patches, w2d, b2d)

    if m_pad != M:
        out = out[:M]
    return out.reshape(B, num_patches, E)


def _reference(x, weight, bias, patch_size):
    # Pure-JAX f32 reference via lax conv (NCDHW, OIDHW).
    y = jax.lax.conv_general_dilated(
        x, weight, window_strides=patch_size, padding="VALID",
        dimension_numbers=("NCDHW", "OIDHW", "NCDHW"))
    y = y + bias.reshape(1, -1, 1, 1, 1)
    B, E = y.shape[0], y.shape[1]
    return y.reshape(B, E, -1).transpose(0, 2, 1)


if __name__ == "__main__":
    # Small config consistent with the module: vol 16^3, patch 4^3, 2 chans, embed 128.
    vol_size = (16, 16, 16)
    patch_size = (4, 4, 4)
    in_chans = 2
    embed_dim = 128
    B = 2

    key = jax.random.PRNGKey(0)
    kx, kw, kb = jax.random.split(key, 3)

    x = jax.random.normal(kx, (B, in_chans) + vol_size, dtype=jnp.float32)
    weight = jax.random.normal(
        kw, (embed_dim, in_chans) + patch_size, dtype=jnp.float32) * 0.02
    bias = jax.random.normal(kb, (embed_dim,), dtype=jnp.float32) * 0.02

    # Parameter prep is hoisted out of the jitted forward (done once per model).
    w2d, b2d = prepare_proj_params(weight, bias)

    fwd = jax.jit(functools.partial(patch_embed_3d, patch_size=patch_size))
    out = fwd(x, w2d, b2d)
    out = jax.block_until_ready(out)

    ref = _reference(x, weight, bias, patch_size)
    assert out.shape == ref.shape == (B, 4 * 4 * 4, embed_dim)
    # bf16 matmul (f32 accumulation) vs f32 conv reference: ~1e-2 scale tolerance.
    assert jnp.allclose(out, ref, atol=2e-2, rtol=2e-2), float(
        jnp.max(jnp.abs(out - ref)))

    print("KERNEL_OK")
</pallas_src>

<mosaic_0001>
module attributes {stable_mosaic.version = 11 : i64} {
  func.func @_patch_embed_kernel(%arg0: i32, %arg1: i32, %arg2: memref<64x128xbf16, #tpu.memory_space<vmem>>, %arg3: memref<128x128xbf16, #tpu.memory_space<vmem>>, %arg4: memref<1x128xf32, #tpu.memory_space<vmem>>, %arg5: memref<64x128xf32, #tpu.memory_space<vmem>>) attributes {dimension_semantics = [#tpu.dimension_semantics<parallel>, #tpu.dimension_semantics<parallel>], iteration_bounds = array<i64: 2, 1>, scalar_prefetch = 0 : i64, scratch_operands = 0 : i64, tpu.core_type = #tpu.core_type<tc>, window_params = [{transform_indices = @transform_0, window_bounds = array<i64: 64, 128>}, {transform_indices = @transform_1, window_bounds = array<i64: 128, 128>}, {transform_indices = @transform_2, window_bounds = array<i64: 1, 128>}, {transform_indices = @transform_3, window_bounds = array<i64: 64, 128>}]} {
    %c0 = arith.constant 0 : index
    %c0_0 = arith.constant 0 : index
    %0 = vector.load %arg2[%c0, %c0_0] : memref<64x128xbf16, #tpu.memory_space<vmem>>, vector<64x128xbf16>
    %c0_1 = arith.constant 0 : index
    %c0_2 = arith.constant 0 : index
    %1 = vector.load %arg3[%c0_1, %c0_2] : memref<128x128xbf16, #tpu.memory_space<vmem>>, vector<128x128xbf16>
    %cst = arith.constant dense<0.000000e+00> : vector<64x128xf32>
    %2 = tpu.matmul %0, %1, %cst {dimension_numbers = #tpu.dot_dimension_numbers<[1], [0], [0], [1], [0, 0, 1, 1], [], []>} : vector<64x128xbf16>, vector<128x128xbf16>, vector<64x128xf32> -> vector<64x128xf32>
    %c0_3 = arith.constant 0 : index
    %c0_4 = arith.constant 0 : index
    %3 = vector.load %arg4[%c0_3, %c0_4] : memref<1x128xf32, #tpu.memory_space<vmem>>, vector<1x128xf32>
    %4 = vector.broadcast %3 : vector<1x128xf32> to vector<64x128xf32>
    %5 = arith.addf %2, %4 : vector<64x128xf32>
    %c0_5 = arith.constant 0 : index
    %c0_6 = arith.constant 0 : index
    %6 = vector.load %arg5[%c0_5, %c0_6] : memref<64x128xf32, #tpu.memory_space<vmem>>, vector<64x128xf32>
    tpu.vector_store %arg5[%c0_5, %c0_6], %5 {strides = array<i32>} : memref<64x128xf32, #tpu.memory_space<vmem>>, vector<64x128xf32>,
    return
  }
  func.func @transform_0(%arg0: i32, %arg1: i32) -> (i32, i32) {
    %c0_i32 = arith.constant 0 : i32
    %c0_i32_0 = arith.constant 0 : i32
    return %arg0, %c0_i32 : i32, i32
  }
  func.func @transform_1(%arg0: i32, %arg1: i32) -> (i32, i32) {
    %c0_i32 = arith.constant 0 : i32
    %c0_i32_0 = arith.constant 0 : i32
    return %c0_i32, %arg1 : i32, i32
  }
  func.func @transform_2(%arg0: i32, %arg1: i32) -> (i32, i32) {
    %c0_i32 = arith.constant 0 : i32
    %c0_i32_0 = arith.constant 0 : i32
    return %c0_i32, %arg1 : i32, i32
  }
  func.func @transform_3(%arg0: i32, %arg1: i32) -> (i32, i32) {
    %c0_i32 = arith.constant 0 : i32
    return %arg0, %arg1 : i32, i32
  }
}

</mosaic_0001>

<llo_original>
// kernel: patch_embed_3d.1
$region0: #{patch_embed_3d.1}
  #allocation0 [shape = 'u32[]', space=smem, size = 0x4, offset = 0x4, fixed_abs, tag = 'smem constant byte address 0x4 - core index']
  #allocation1 [shape = 'u32[144,128]{1,0:T(1,128)}', space=vmem, size = 0x12000, scoped, tag = 'internal scratch']
  %s0 = inlined_call_operand.vmem [shape: bf16[128,128], index: 0, kind: input, shape index: {}]
  %s1 = inlined_call_operand.vmem [shape: bf16[128,128], index: 1, kind: input, shape index: {}]
  %s2 = inlined_call_operand.vmem [shape: f32[1,128], index: 2, kind: input, shape index: {}]
  %s3 = inlined_call_operand.hbm [shape: f32[128,128], index: 3, kind: output, shape index: {}]
  %s4 = sld [smem:[#allocation0]]
  $region45: #{patch_embed_3d.1} parent=0
    _
  %s6 = ssub.s32 1, %s4
  %s7 = scalar_select 0, %s6, %s4
  $region1: #{patch_embed_3d.1} parent=0
    #allocation2 [shape = 'u8[65536]{0}', space=vmem, size = 0x10000, scoped, tag = 'output window, operand 0']
    #allocation3 [shape = 's32[2]{0}', space=sflag, size = 0x8, scoped, tag = 'scoped memory for patch_embed_3d.1']
    %8 = vsyncpa [#allocation3], 0
    %s9 = scalar_lea.sflag [#allocation3], 1
    %10 = vsyncpa %s9, 0
    loop: start=0, step=1, limit=4
    $region2: #{patch_embed_3d.1} parent=1 // loop_pre_header
      _
    $region3: #{patch_embed_3d.1} parent=1 // loop_header
      %s12 = sphi 0, %s16
      %p13 = scmp.ge.s32.totalorder %s12, 4
      %s19 = sphi 0, %s31
      %s20 = sphi 0, %s27
      %s21 = sphi 0, %s19
      %s22 = sphi 0, %s20
      %s23 = sphi 0, %s21
      %s24 = sphi 0, %s22
      %s34 = sphi 0, %s36
      %s37 = sphi 0, %s34
      %s38 = sphi 0, %s37
      %s54 = sphi 0, %s38
      %s60 = sphi 0, %s62
      %s63 = sphi 0, %s60
      %s64 = sphi 0, %s63
      %s80 = sphi 0, %s64
      %s86 = sphi 0, %s88
      %s89 = sphi 0, %s86
      %s90 = sphi 0, %s89
      %s106 = sphi 0, %s90
      %s114 = sphi 0, %s116
      %s117 = sphi 0, %s114
      %s118 = sphi 0, %s117
      %s134 = sphi 0, %s118
    $region4: #{patch_embed_3d.1} parent=1 // loop_header_branch
      %15 = sbr.rel (%p13) target = $region8
    $region5: #{patch_embed_3d.1} parent=1 // loop_body
      %s17 = ssub.s32 %s12, 1
      %s18 = ssub.s32 %s12, 2
      %s25 = sadd.s32 1, %s20
      %p26 = scmp.ge.s32.totalorder %s25, 1
      %s27 = scalar_select %p26, 0, %s25
      %s28 = sadd.s32 1, %s19
      %s29 = scalar_select %p26, %s28, %s19
      %p30 = scmp.ge.s32.totalorder %s29, 2
      %s31 = scalar_select %p30, 0, %s29
      %s32 = ssub.s32 %s19, %s31
      %p33 = scmp.eq.s32.totalorder %s32, 0
      %s35 = sadd.s32 %s34, 1
      %s36 = scalar_select %p33, %s34, %s35
      %p39 = pneg %p33
      %p40 = scmp.eq.s32.totalorder %s12, 1
      %p41 = por %p39, %p40
      %p42 = scmp.ne.s32.totalorder %s34, %s37
      %p43 = scmp.eq.s32.totalorder %s12, 0
      %p44 = por %p42, %p43
      %p45 = scmp.ne.s32.totalorder %s34, %s37
      %p46 = scmp.eq.s32.totalorder %s17, 1
      %p47 = por %p45, %p46
      %p48 = scmp.ne.s32.totalorder %s37, %s38
      %p49 = scmp.eq.s32.totalorder %s17, 0
      %p50 = por %p48, %p49
      %p51 = scmp.ne.s32.totalorder %s37, %s38
      %p52 = scmp.eq.s32.totalorder %s18, 1
      %p53 = por %p51, %p52
      %p55 = scmp.ne.s32.totalorder %s38, %s54
      %p56 = scmp.eq.s32.totalorder %s18, 0
      %p57 = por %p55, %p56
      %s58 = ssub.s32 %s20, %s27
      %p59 = scmp.eq.s32.totalorder %s58, 0
      %s61 = sadd.s32 %s60, 1
      %s62 = scalar_select %p59, %s60, %s61
      %p65 = pneg %p59
      %p66 = scmp.eq.s32.totalorder %s12, 1
      %p67 = por %p65, %p66
      %p68 = scmp.ne.s32.totalorder %s60, %s63
      %p69 = scmp.eq.s32.totalorder %s12, 0
      %p70 = por %p68, %p69
      %p71 = scmp.ne.s32.totalorder %s60, %s63
      %p72 = scmp.eq.s32.totalorder %s17, 1
      %p73 = por %p71, %p72
      %p74 = scmp.ne.s32.totalorder %s63, %s64
      %p75 = scmp.eq.s32.totalorder %s17, 0
      %p76 = por %p74, %p75
      %p77 = scmp.ne.s32.totalorder %s63, %s64
      %p78 = scmp.eq.s32.totalorder %s18, 1
      %p79 = por %p77, %p78
      %p81 = scmp.ne.s32.totalorder %s64, %s80
      %p82 = scmp.eq.s32.totalorder %s18, 0
      %p83 = por %p81, %p82
      %s84 = ssub.s32 %s20, %s27
      %p85 = scmp.eq.s32.totalorder %s84, 0
      %s87 = sadd.s32 %s86, 1
      %s88 = scalar_select %p85, %s86, %s87
      %p91 = pneg %p85
      %p92 = scmp.eq.s32.totalorder %s12, 1
      %p93 = por %p91, %p92
      %p94 = scmp.ne.s32.totalorder %s86, %s89
      %p95 = scmp.eq.s32.totalorder %s12, 0
      %p96 = por %p94, %p95
      %p97 = scmp.ne.s32.totalorder %s86, %s89
      %p98 = scmp.eq.s32.totalorder %s17, 1
      %p99 = por %p97, %p98
      %p100 = scmp.ne.s32.totalorder %s89, %s90
      %p101 = scmp.eq.s32.totalorder %s17, 0
      %p102 = por %p100, %p101
      %p103 = scmp.ne.s32.totalorder %s89, %s90
      %p104 = scmp.eq.s32.totalorder %s18, 1
      %p105 = por %p103, %p104
      %p107 = scmp.ne.s32.totalorder %s90, %s106
      %p108 = scmp.eq.s32.totalorder %s18, 0
      %p109 = por %p107, %p108
      %s110 = ssub.s32 %s19, %s31
      %s111 = ssub.s32 %s20, %s27
      %s112 = sor.u32 %s110, %s111
      %p113 = scmp.eq.s32.totalorder %s112, 0
      %s115 = sadd.s32 %s114, 1
      %s116 = scalar_select %p113, %s114, %s115
      %p119 = pneg %p113
      %p120 = scmp.eq.s32.totalorder %s12, 1
      %p121 = por %p119, %p120
      %p122 = scmp.ne.s32.totalorder %s114, %s117
      %p123 = scmp.eq.s32.totalorder %s12, 0
      %p124 = por %p122, %p123
      %p125 = scmp.ne.s32.totalorder %s114, %s117
      %p126 = scmp.eq.s32.totalorder %s17, 1
      %p127 = por %p125, %p126
      %p128 = scmp.ne.s32.totalorder %s117, %s118
      %p129 = scmp.eq.s32.totalorder %s17, 0
      %p130 = por %p128, %p129
      %p131 = scmp.ne.s32.totalorder %s117, %s118
      %p132 = scmp.eq.s32.totalorder %s18, 1
      %p133 = por %p131, %p132
      %p135 = scmp.ne.s32.totalorder %s118, %s134
      %p136 = scmp.eq.s32.totalorder %s18, 0
      %p137 = por %p135, %p136
      %p138 = scmp.le.s32.totalorder 1, %s12
      %p139 = scmp.lt.s32.totalorder %s12, 3
      %p140 = pnand %p138, %p139
      %p141 = pneg %p140
      // Predicated region
      $region9: #{patch_embed_3d.1} parent=5 // pred_check
        _
      $region10: #{patch_embed_3d.1} parent=5 // pred_check_branch
        %143 = sbr.rel (%p140) target = $region12
      $region11: #{patch_embed_3d.1} parent=5 // pred_region
        %s144 = ssub.s32 %s12, 1
        // Predicated region
        $region13: #{patch_embed_3d.1} parent=11 // pred_check
          %p145 = pneg %p76
        $region14: #{patch_embed_3d.1} parent=11 // pred_check_branch
          %147 = sbr.rel (%p145) target = $region16
        $region15: #{patch_embed_3d.1} parent=11 // pred_region
          %p148 = scmp.lt.s32.totalorder %s22, 0
          %s149 = scalar_select %p148, %s22, 0
          %s150 = smul.addr %s149, 4
          %s151 = scalar_lea.vmem %s1, %s150
        $region16: #{patch_embed_3d.1} parent=11 // pred_fallthru
          _
        // Predicated region
        $region17: #{patch_embed_3d.1} parent=11 // pred_check
          %p152 = pneg %p102
        $region18: #{patch_embed_3d.1} parent=11 // pred_check_branch
          %154 = sbr.rel (%p152) target = $region20
        $region19: #{patch_embed_3d.1} parent=11 // pred_region
          %p155 = scmp.lt.s32.totalorder %s22, 0
          %s156 = scalar_select %p155, %s22, 0
          %s157 = scalar_lea.vmem %s2, %s156
        $region20: #{patch_embed_3d.1} parent=11 // pred_fallthru
          _
      $region12: #{patch_embed_3d.1} parent=5 // pred_fallthru
        _
      %p158 = scmp.lt.s32.totalorder %s12, 2
      // Predicated region
      $region21: #{patch_embed_3d.1} parent=5 // pred_check
        %p159 = pneg %p158
      $region22: #{patch_embed_3d.1} parent=5 // pred_check_branch
        %161 = sbr.rel (%p159) target = $region24
      $region23: #{patch_embed_3d.1} parent=5 // pred_region
        // Predicated region
        $region25: #{patch_embed_3d.1} parent=23 // pred_check
          %p162 = pneg %p44
        $region26: #{patch_embed_3d.1} parent=23 // pred_check_branch
          %164 = sbr.rel (%p162) target = $region28
        $region27: #{patch_embed_3d.1} parent=23 // pred_region
          %s165 = smul.u32 8, %s19
          %p166 = scmp.lt.s32.totalorder %s165, 15
          %s167 = scalar_select %p166, %s165, 15
          %s168 = smul.addr %s167, 4
          %s169 = scalar_lea.vmem %s0, %s168
          %s170 = smul.u32 8, %s19
        $region28: #{patch_embed_3d.1} parent=23 // pred_fallthru
          _
      $region24: #{patch_embed_3d.1} parent=5 // pred_fallthru
        _
      %p171 = scmp.le.s32.totalorder 1, %s12
      %p172 = scmp.lt.s32.totalorder %s12, 3
      %p173 = pnand %p171, %p172
      %p174 = pneg %p173
      // Predicated region
      $region29: #{patch_embed_3d.1} parent=5 // pred_check
        _
      $region30: #{patch_embed_3d.1} parent=5 // pred_check_branch
        %176 = sbr.rel (%p173) target = $region32
      $region31: #{patch_embed_3d.1} parent=5 // pred_region
        %s177 = ssub.s32 %s12, 1
        %s178 = smul.u32 8, %s21
        %p179 = scmp.lt.s32.totalorder %s178, 15
        %s180 = scalar_select %p179, %s178, 15
        %s181 = smul.addr %s180, 4
        %s182 = scalar_lea.vmem %s0, %s181
        %p183 = pneg %p50
        %p184 = pneg %p47
        %p185 = scmp.lt.s32.totalorder %s22, 0
        %s186 = scalar_select %p185, %s22, 0
        %s187 = smul.addr %s186, 4
        %s188 = scalar_lea.vmem %s1, %s187
        %p189 = pneg %p76
        %p190 = pneg %p73
        %p191 = scmp.lt.s32.totalorder %s22, 0
        %s192 = scalar_select %p191, %s22, 0
        %s193 = scalar_lea.vmem %s2, %s192
        %p194 = pneg %p102
        %p195 = pneg %p99
        %p196 = pneg %p130
        %p197 = pneg %p127
        %s198 = sand.u32 %s117, 1
        %s199 = scalar_lea.sflag [#allocation3], %s198
        %s200 = sand.u32 %s117, 1
        %s201 = smul.addr %s200, 64
        %s202 = scalar_lea.vmem [#allocation2], %s201
        %s203 = smul.u32 8, %s21
        %p204 = scmp.lt.s32.totalorder %s203, 15
        %s205 = scalar_select %p204, %s203, 15
        %s206 = smul.addr %s205, 4
        %s207 = scalar_lea.vmem %s0, %s206
        %s208 = smul.u32 8, %s21
        %p209 = scmp.lt.s32.totalorder %s22, 0
        %s210 = scalar_select %p209, %s22, 0
        %s211 = smul.addr %s210, 4
        %s212 = scalar_lea.vmem %s1, %s211
        %p213 = scmp.lt.s32.totalorder %s22, 0
        %s214 = scalar_select %p213, %s22, 0
        %s215 = scalar_lea.vmem %s2, %s214
        %s216 = smul.u32 8, %s21
        %v218 = vld [vmem:[%s207] sm:$0xf]
        %v219 = vld [vmem:[%s207 + $0x4] sm:$0xf]
        %v220 = vld [vmem:[%s207 + $0x8] sm:$0xf]
        %v221 = vld [vmem:[%s207 + $0xc] sm:$0xf]
        %v222 = vld [vmem:[%s207 + $0x10] sm:$0xf]
        %v223 = vld [vmem:[%s207 + $0x14] sm:$0xf]
        %v224 = vld [vmem:[%s207 + $0x18] sm:$0xf]
        %v225 = vld [vmem:[%s207 + $0x1c] sm:$0xf]
        %v226 = vld [vmem:[%s212] sm:$0xf]
        %v227 = vld [vmem:[%s212 + $0x4] sm:$0xf]
        %v228 = vld [vmem:[%s212 + $0x8] sm:$0xf]
        %v229 = vld [vmem:[%s212 + $0xc] sm:$0xf]
        %v230 = vld [vmem:[%s212 + $0x10] sm:$0xf]
        %v231 = vld [vmem:[%s212 + $0x14] sm:$0xf]
        %v232 = vld [vmem:[%s212 + $0x18] sm:$0xf]
        %v233 = vld [vmem:[%s212 + $0x1c] sm:$0xf]
        %v234 = vld [vmem:[%s212 + $0x20] sm:$0xf]
        %v235 = vld [vmem:[%s212 + $0x24] sm:$0xf]
        %v236 = vld [vmem:[%s212 + $0x28] sm:$0xf]
        %v237 = vld [vmem:[%s212 + $0x2c] sm:$0xf]
        %v238 = vld [vmem:[%s212 + $0x30] sm:$0xf]
        %v239 = vld [vmem:[%s212 + $0x34] sm:$0xf]
        %v240 = vld [vmem:[%s212 + $0x38] sm:$0xf]
        %v241 = vld [vmem:[%s212 + $0x3c] sm:$0xf]
        %v242 = vld [vmem:[%s215] sm:$0x1]
        %v244 = vlaneseq
        %v245 = vshrl.u32 %v244, 7
        %v246 = vsub.s32 0, %v245
        %v247 = vrot.slane %v242, %v246
        %v257 = vunpack.c.l.b16 %v218
        %v258 = vunpack.c.l.b16 %v219
        %v259 = vunpack.c.l.b16 %v220
        %v260 = vunpack.c.l.b16 %v221
        %v261 = vunpack.c.l.b16 %v222
        %v262 = vunpack.c.l.b16 %v223
        %v263 = vunpack.c.l.b16 %v224
        %v264 = vunpack.c.l.b16 %v225
        %v265 = vpack.c.b16 %v258, %v257
        %v266 = vpack.c.b16 %v260, %v259
        %v267 = vpack.c.b16 %v262, %v261
        %v268 = vpack.c.b16 %v264, %v263
        %v289 = vunpack.c.l.b16 %v226
        %v290 = vunpack.c.l.b16 %v227
        %v291 = vunpack.c.l.b16 %v228
        %v292 = vunpack.c.l.b16 %v229
        %v293 = vunpack.c.l.b16 %v230
        %v294 = vunpack.c.l.b16 %v231
        %v295 = vunpack.c.l.b16 %v232
        %v296 = vunpack.c.l.b16 %v233
        %v297 = vunpack.c.l.b16 %v234
        %v298 = vunpack.c.l.b16 %v235
        %v299 = vunpack.c.l.b16 %v236
        %v300 = vunpack.c.l.b16 %v237
        %v301 = vunpack.c.l.b16 %v238
        %v302 = vunpack.c.l.b16 %v239
        %v303 = vunpack.c.l.b16 %v240
        %v304 = vunpack.c.l.b16 %v241
        %v305 = vpack.c.b16 %v290, %v289
        %v306 = vpack.c.b16 %v292, %v291
        %v307 = vpack.c.b16 %v294, %v293
        %v308 = vpack.c.b16 %v296, %v295
        %v309 = vpack.c.b16 %v298, %v297
        %v310 = vpack.c.b16 %v300, %v299
        %v311 = vpack.c.b16 %v302, %v301
        %v312 = vpack.c.b16 %v304, %v303
        %321 = vmatprep.subr.bf16.mxu0 0
        %322 = vmatpush1.bf16.msra.mxu0 %v305
        %323 = vmatprep.subr.bf16.mxu0 0
        %324 = vmatpush1.bf16.msra.mxu0 %v306
        %325 = vmatprep.subr.bf16.mxu0 0
        %326 = vmatpush1.bf16.msra.mxu0 %v307
        %327 = vmatprep.subr.bf16.mxu0 0
        %328 = vmatpush1.bf16.msra.mxu0 %v308
        %329 = vmatprep.subr.bf16.mxu0 0
        %330 = vmatpush1.bf16.msra.mxu0 %v309
        %331 = vmatprep.subr.bf16.mxu0 0
        %332 = vmatpush1.bf16.msra.mxu0 %v310
        %333 = vmatprep.subr.bf16.mxu0 0
        %334 = vmatpush1.bf16.msra.mxu0 %v311
        %335 = vmatprep.subr.bf16.mxu0 0
        %336 = vmatpush1.bf16.msra.mxu0 %v312
        %337 = vmatprep.subr.bf16.mxu0 0
        %338 = vmatpush1.bf16.msra.mxu0 0
        %339 = vmatprep.subr.bf16.mxu0 0
        %340 = vmatpush1.bf16.msra.mxu0 0
        %341 = vmatprep.subr.bf16.mxu0 0
        %342 = vmatpush1.bf16.msra.mxu0 0
        %343 = vmatprep.subr.bf16.mxu0 0
        %344 = vmatpush1.bf16.msra.mxu0 0
        %345 = vmatprep.subr.bf16.mxu0 0
        %346 = vmatpush1.bf16.msra.mxu0 0
        %347 = vmatprep.subr.bf16.mxu0 0
        %348 = vmatpush1.bf16.msra.mxu0 0
        %349 = vmatprep.subr.bf16.mxu0 0
        %350 = vmatpush1.bf16.msra.mxu0 0
        %351 = vmatprep.subr.bf16.mxu0 0
        %352 = vmatpush1.bf16.msra.mxu0 0
        %353 = vmatprep.mubr.bf16.mxu0 0
        %354 = vmatmul.mubr.bf16.gmra.mrb[0].mxu0 %v265
        %v355 = vpop.f32.mrb[0].mxu0
        %v356 = vadd.f32 %v247, %v355
        %v357 = vpop.f32.mrb[0].mxu0
        %v358 = vpop.f32.mrb[0].mxu0
        %v359 = vadd.f32 %v247, %v358
        %v360 = vpop.f32.mrb[0].mxu0
        %361 = vmatprep.mubr.bf16.mxu0 0
        %362 = vmatmul.mubr.bf16.gmra.mrb[0].mxu0 %v266
        %v363 = vpop.f32.mrb[0].mxu0
        %v364 = vadd.f32 %v247, %v363
        %v365 = vpop.f32.mrb[0].mxu0
        %v366 = vpop.f32.mrb[0].mxu0
        %v367 = vadd.f32 %v247, %v366
        %v368 = vpop.f32.mrb[0].mxu0
        %369 = vmatprep.mubr.bf16.mxu0 0
        %370 = vmatmul.mubr.bf16.gmra.mrb[0].mxu0 %v267
        %v371 = vpop.f32.mrb[0].mxu0
        %v372 = vadd.f32 %v247, %v371
        %v373 = vpop.f32.mrb[0].mxu0
        %v374 = vpop.f32.mrb[0].mxu0
        %v375 = vadd.f32 %v247, %v374
        %v376 = vpop.f32.mrb[0].mxu0
        %377 = vmatprep.mubr.bf16.mxu0 0
        %378 = vmatmul.mubr.bf16.gmra.mrb[0].mxu0 %v268
        %v379 = vpop.f32.mrb[0].mxu0
        %v380 = vadd.f32 %v247, %v379
        %v381 = vpop.f32.mrb[0].mxu0
        %v382 = vpop.f32.mrb[0].mxu0
        %v383 = vadd.f32 %v247, %v382
        %v384 = vpop.f32.mrb[0].mxu0
        %385 = vdwg.mxu0
        %386 = vst [vmem:[%s202] sm:$0xff] %v356
        %387 = vst [vmem:[%s202 + $0x8] sm:$0xff] %v359
        %388 = vst [vmem:[%s202 + $0x10] sm:$0xff] %v364
        %389 = vst [vmem:[%s202 + $0x18] sm:$0xff] %v367
        %390 = vst [vmem:[%s202 + $0x20] sm:$0xff] %v372
        %391 = vst [vmem:[%s202 + $0x28] sm:$0xff] %v375
        %392 = vst [vmem:[%s202 + $0x30] sm:$0xff] %v380
        %393 = vst [vmem:[%s202 + $0x38] sm:$0xff] %v383
        %s394 = sand.u32 %s117, 1
        %s395 = scalar_lea.sflag [#allocation3], %s394
        %s396 = sand.u32 %s117, 1
        %s397 = smul.addr %s396, 64
        %s398 = scalar_lea.vmem [#allocation2], %s397
        // Predicated region
        $region33: #{patch_embed_3d.1} parent=31 // pred_check
          %p399 = pneg %p127
        $region34: #{patch_embed_3d.1} parent=31 // pred_check_branch
          %401 = sbr.rel (%p399) target = $region36
        $region35: #{patch_embed_3d.1} parent=31 // pred_region
          %s402 = smul.u32 8, %s21
          %s404 = ssub.s32 1024, 1024
          %405 = vsyncadd %s395, %s404
          %s406 = sadd.s32 %s22, %s402
          %s407 = smul.addr %s406, 128
          %s408 = scalar_lea.hbm %s3, %s407
          %s409 = sshll.u32 %s398, 4
          %s410 = int_to_ptr.vmem [resolvable:$true] %s409
          %415 = dma.vmem_to_hbm [thread:$0]  %s410, 1024, %s408, %s395, 128, 128, 8
        $region36: #{patch_embed_3d.1} parent=31 // pred_fallthru
          _
      $region32: #{patch_embed_3d.1} parent=5 // pred_fallthru
        _
      %p416 = scmp.le.s32.totalorder 2, %s12
      // Predicated region
      $region37: #{patch_embed_3d.1} parent=5 // pred_check
        %p417 = pneg %p416
      $region38: #{patch_embed_3d.1} parent=5 // pred_check_branch
        %419 = sbr.rel (%p417) target = $region40
      $region39: #{patch_embed_3d.1} parent=5 // pred_region
        %s420 = ssub.s32 %s12, 2
        // Predicated region
        $region41: #{patch_embed_3d.1} parent=39 // pred_check
          %p421 = pneg %p133
        $region42: #{patch_embed_3d.1} parent=39 // pred_check_branch
          %423 = sbr.rel (%p421) target = $region44
        $region43: #{patch_embed_3d.1} parent=39 // pred_region
          %s424 = sand.u32 %s118, 1
          %s425 = scalar_lea.sflag [#allocation3], %s424
          %s426 = sand.u32 %s118, 1
          %s427 = smul.addr %s426, 64
          %s428 = scalar_lea.vmem [#allocation2], %s427
          %429 = dma.done %s425, 1024
        $region44: #{patch_embed_3d.1} parent=39 // pred_fallthru
          _
      $region40: #{patch_embed_3d.1} parent=5 // pred_fallthru
        _
    $region6: #{patch_embed_3d.1} parent=1 // loop_footer
      %s16 = sadd.s32 1, %s12
    $region7: #{patch_embed_3d.1} parent=1 // loop_footer_branch
      %11 = sbr.rel target = $region3
    $region8: #{patch_embed_3d.1} parent=1 // loop_exit
      _
    %430 = vsyncpa [#allocation3], 1
    %s431 = scalar_lea.sflag [#allocation3], 1
    %432 = vsyncpa %s431, 1

</llo_original>
